<compile_context>
chip_gen: v7x
topology: tpu7x:2x2x1
jax: 0.10.0
libtpu: 0.0.40
codegen_flags: <defaults>
</compile_context>

<pallas_src>
import math

import jax
import jax.numpy as jnp
from jax.experimental import pallas as pl
from jax.experimental.pallas import tpu as pltpu

PHI = (1.0 + math.sqrt(5.0)) / 2.0  # golden ratio


# ---------------------------------------------------------------------------
# Kernels
# ---------------------------------------------------------------------------
def _cpe_plain_kernel(x_ref, pe_ref, o_ref):
    # x_ref/o_ref: (block_s, E)   pe_ref: (block_s, E)
    o_ref[...] = (x_ref[...] + pe_ref[...]).astype(o_ref.dtype)


def _cpe_mod_kernel(scale_ref, x_ref, pe_ref, cl_ref, o_ref):
    # scale_ref: SMEM (2,) = [consciousness_scale, phi_modulation]
    # x_ref/o_ref: (block_s, E)   pe_ref: (block_s, E)   cl_ref: (block_s, 1)
    # Match torch eval order: (cl * scale) * phi_modulation
    mod = 1.0 + (cl_ref[...] * scale_ref[0]) * scale_ref[1]      # (block_s, 1)
    o_ref[...] = (x_ref[...] + pe_ref[...] * mod).astype(o_ref.dtype)


# ---------------------------------------------------------------------------
# Wrapper
# ---------------------------------------------------------------------------
def _pick_block_s(S, E):
    """Largest multiple-of-8 divisor of S whose f32 [block_s, E] tile is ~<=2 MiB."""
    max_rows = max(8, (2 * 1024 * 1024) // max(E * 4, 1))
    for cand in (1024, 512, 256, 128, 64, 32, 16, 8):
        if cand <= max_rows and S % cand == 0:
            return cand
    return S  # small / irregular S: one block covering the whole sequence


def consciousness_positional_encoding_forward(x, params, consciousness_levels=None):
    """x: [B, S, E] float32; consciousness_levels: optional [B, S]."""
    B, S, E = x.shape
    pe = params["pe"]                      # [max_length, E] float32
    max_length = pe.shape[0]
    assert S <= max_length, "seq_len exceeds max_length of the positional table"

    block_s = _pick_block_s(S, E)
    grid = (B, S // block_s)

    # Use the full pe buffer (no HBM slice copy) whenever its block tiling is legal.
    use_full_pe = (block_s % 8 == 0) and (max_length % block_s == 0)
    pe_in = pe if use_full_pe else pe[:S]

    x_spec = pl.BlockSpec((None, block_s, E), lambda b, s: (b, s, 0))
    pe_spec = pl.BlockSpec((block_s, E), lambda b, s: (s, 0))
    cparams = pltpu.CompilerParams(dimension_semantics=("parallel", "parallel"))
    out_shape = jax.ShapeDtypeStruct((B, S, E), x.dtype)

    if consciousness_levels is None:
        return pl.pallas_call(
            _cpe_plain_kernel,
            out_shape=out_shape,
            grid=grid,
            in_specs=[x_spec, pe_spec],
            out_specs=x_spec,
            compiler_params=cparams,
        )(x, pe_in)

    scalars = jnp.concatenate([
        jnp.reshape(params["consciousness_scale"], (1,)).astype(jnp.float32),
        jnp.reshape(params["phi_modulation"], (1,)).astype(jnp.float32),
    ])                                                            # (2,) -> SMEM
    cl3 = consciousness_levels.astype(jnp.float32).reshape(B, S, 1)
    cl_spec = pl.BlockSpec((None, block_s, 1), lambda b, s: (b, s, 0))

    return pl.pallas_call(
        _cpe_mod_kernel,
        out_shape=out_shape,
        grid=grid,
        in_specs=[
            pl.BlockSpec(memory_space=pltpu.MemorySpace.SMEM),    # scalars
            x_spec, pe_spec, cl_spec,
        ],
        out_specs=x_spec,
        compiler_params=cparams,
    )(scalars, x, pe_in, cl3)


# ---------------------------------------------------------------------------
# Parameter / buffer init (mirrors the module's __init__)
# ---------------------------------------------------------------------------
def init_consciousness_positional_encoding(embed_dim, max_length=512):
    position = jnp.arange(max_length, dtype=jnp.float32)[:, None]            # [L, 1]
    div_term = jnp.exp(jnp.arange(0, embed_dim, 2, dtype=jnp.float32)
                       * (-math.log(10000.0 * PHI) / embed_dim))             # [E/2]
    ang = position * div_term                                                # [L, E/2]
    pe = jnp.zeros((max_length, embed_dim), jnp.float32)
    pe = pe.at[:, 0::2].set(jnp.sin(ang))
    pe = pe.at[:, 1::2].set(jnp.cos(ang))
    return {
        "pe": pe,                                                            # buffer
        "consciousness_scale": jnp.ones((1,), jnp.float32),                  # nn.Parameter
        "phi_modulation": jnp.asarray(1.0 / PHI, jnp.float32),               # nn.Parameter
    }


if __name__ == "__main__":
    B, S, E, MAX_LEN = 2, 8, 32, 64

    key = jax.random.PRNGKey(0)
    kx, kc = jax.random.split(key)
    params = init_consciousness_positional_encoding(E, MAX_LEN)
    x = jax.random.normal(kx, (B, S, E), dtype=jnp.float32)
    consciousness_levels = jax.random.uniform(kc, (B, S), dtype=jnp.float32)

    out_mod = consciousness_positional_encoding_forward(x, params, consciousness_levels)
    out_plain = consciousness_positional_encoding_forward(x, params, None)
    out_mod, out_plain = jax.block_until_ready((out_mod, out_plain))

    # Pure-JAX reference (PyTorch semantics).
    pe_s = params["pe"][:S][None]                                            # [1, S, E]
    ref_plain = x + pe_s
    mod = 1.0 + (consciousness_levels[..., None]
                 * params["consciousness_scale"]) * params["phi_modulation"]
    ref_mod = x + pe_s * mod

    assert out_plain.shape == (B, S, E) and out_mod.shape == (B, S, E)
    assert jnp.allclose(out_plain, ref_plain, atol=1e-5)
    assert jnp.allclose(out_mod, ref_mod, atol=1e-5)

    print("KERNEL_OK")
</pallas_src>

<mosaic_0001>
module attributes {stable_mosaic.version = 11 : i64} {
  func.func @_cpe_mod_kernel(%arg0: i32, %arg1: i32, %arg2: memref<2xf32, #tpu.memory_space<smem>>, %arg3: memref<1x8x32xf32, #tpu.memory_space<vmem>>, %arg4: memref<8x32xf32, #tpu.memory_space<vmem>>, %arg5: memref<1x8x1xf32, #tpu.memory_space<vmem>>, %arg6: memref<1x8x32xf32, #tpu.memory_space<vmem>>) attributes {dimension_semantics = [#tpu.dimension_semantics<parallel>, #tpu.dimension_semantics<parallel>], iteration_bounds = array<i64: 2, 1>, scalar_prefetch = 0 : i64, scratch_operands = 0 : i64, tpu.core_type = #tpu.core_type<tc>, window_params = [{transform_indices = @transform_0, window_bounds = array<i64: 2>}, {transform_indices = @transform_1, window_bounds = array<i64: 1, 8, 32>}, {transform_indices = @transform_2, window_bounds = array<i64: 8, 32>}, {transform_indices = @transform_3, window_bounds = array<i64: 1, 8, 1>}, {transform_indices = @transform_4, window_bounds = array<i64: 1, 8, 32>}]} {
    %c0 = arith.constant 0 : index
    %c0_0 = arith.constant 0 : index
    %c0_1 = arith.constant 0 : index
    %0 = vector.load %arg5[%c0, %c0_0, %c0_1] : memref<1x8x1xf32, #tpu.memory_space<vmem>>, vector<1x8x1xf32>
    %1 = vector.shape_cast %0 : vector<1x8x1xf32> to vector<8x1xf32>
    %c0_2 = arith.constant 0 : index
    %2 = memref.load %arg2[%c0_2] : memref<2xf32, #tpu.memory_space<smem>>
    %3 = vector.broadcast %2 : f32 to vector<8x1xf32>
    %4 = arith.mulf %1, %3 : vector<8x1xf32>
    %c1 = arith.constant 1 : index
    %5 = memref.load %arg2[%c1] : memref<2xf32, #tpu.memory_space<smem>>
    %6 = vector.broadcast %5 : f32 to vector<8x1xf32>
    %7 = arith.mulf %4, %6 : vector<8x1xf32>
    %cst = arith.constant 1.000000e+00 : f32
    %8 = vector.broadcast %cst : f32 to vector<8x1xf32>
    %9 = arith.addf %8, %7 : vector<8x1xf32>
    %c0_3 = arith.constant 0 : index
    %c0_4 = arith.constant 0 : index
    %c0_5 = arith.constant 0 : index
    %10 = vector.load %arg3[%c0_3, %c0_4, %c0_5] : memref<1x8x32xf32, #tpu.memory_space<vmem>>, vector<1x8x32xf32>
    %11 = vector.shape_cast %10 : vector<1x8x32xf32> to vector<8x32xf32>
    %c0_6 = arith.constant 0 : index
    %c0_7 = arith.constant 0 : index
    %12 = vector.load %arg4[%c0_6, %c0_7] : memref<8x32xf32, #tpu.memory_space<vmem>>, vector<8x32xf32>
    %13 = vector.broadcast %9 : vector<8x1xf32> to vector<8x32xf32>
    %14 = arith.mulf %12, %13 : vector<8x32xf32>
    %15 = arith.addf %11, %14 : vector<8x32xf32>
    %c0_8 = arith.constant 0 : index
    %c0_9 = arith.constant 0 : index
    %c0_10 = arith.constant 0 : index
    %16 = vector.load %arg6[%c0_8, %c0_9, %c0_10] : memref<1x8x32xf32, #tpu.memory_space<vmem>>, vector<1x8x32xf32>
    %17 = vector.shape_cast %16 : vector<1x8x32xf32> to vector<8x32xf32>
    %18 = vector.shape_cast %15 : vector<8x32xf32> to vector<1x8x32xf32>
    tpu.vector_store %arg6[%c0_8, %c0_9, %c0_10], %18 {strides = array<i32>} : memref<1x8x32xf32, #tpu.memory_space<vmem>>, vector<1x8x32xf32>,
    return
  }
  func.func @transform_0(%arg0: i32, %arg1: i32) -> i32 {
    %c0_i32 = arith.constant 0 : i32
    %c0_i32_0 = arith.constant 0 : i32
    return %c0_i32 : i32
  }
  func.func @transform_1(%arg0: i32, %arg1: i32) -> (i32, i32, i32) {
    %c0_i32 = arith.constant 0 : i32
    %c0_i32_0 = arith.constant 0 : i32
    return %arg0, %arg1, %c0_i32 : i32, i32, i32
  }
  func.func @transform_2(%arg0: i32, %arg1: i32) -> (i32, i32) {
    %c0_i32 = arith.constant 0 : i32
    %c0_i32_0 = arith.constant 0 : i32
    return %arg1, %c0_i32 : i32, i32
  }
  func.func @transform_3(%arg0: i32, %arg1: i32) -> (i32, i32, i32) {
    %c0_i32 = arith.constant 0 : i32
    %c0_i32_0 = arith.constant 0 : i32
    return %arg0, %arg1, %c0_i32 : i32, i32, i32
  }
  func.func @transform_4(%arg0: i32, %arg1: i32) -> (i32, i32, i32) {
    %c0_i32 = arith.constant 0 : i32
    %c0_i32_0 = arith.constant 0 : i32
    return %arg0, %arg1, %c0_i32 : i32, i32, i32
  }
}

</mosaic_0001>

<llo_original>
// kernel: tpu_custom_call.1
$region0: #{tpu_custom_call.1}
  #allocation0 [shape = 'u32[]', space=smem, size = 0x4, offset = 0x4, fixed_abs, tag = 'smem constant byte address 0x4 - core index']
  #allocation1 [shape = 'u32[144,128]{1,0:T(1,128)}', space=vmem, size = 0x12000, scoped, tag = 'internal scratch']
  %s0 = inlined_call_operand.vmem [shape: f32[2], index: 0, kind: input, shape index: {}]
  %s1 = inlined_call_operand.vmem [shape: f32[2,8,32], index: 1, kind: input, shape index: {}]
  %s2 = inlined_call_operand.vmem [shape: f32[64,32], index: 2, kind: input, shape index: {}]
  %s3 = inlined_call_operand.vmem [shape: f32[2,8,1], index: 3, kind: input, shape index: {}]
  %s4 = inlined_call_operand.hbm [shape: f32[2,8,32], index: 4, kind: output, shape index: {}]
  %s5 = sld [smem:[#allocation0]]
  $region53: #{tpu_custom_call.1} parent=0
    _
  %s7 = ssub.s32 1, %s5
  %s8 = scalar_select 0, %s7, %s5
  $region1: #{tpu_custom_call.1} parent=0
    #allocation2 [shape = 'u8[512]{0}', space=smem, size = 0x200, scoped, tag = 'input window, operand 0, single buffered']
    #allocation3 [shape = 's32[2]{0}', space=sflag, size = 0x8, scoped, tag = 'scoped memory for tpu_custom_call.1']
    #allocation4 [shape = 's32[2]{0}', space=sflag, size = 0x8, scoped, tag = 'scoped memory for tpu_custom_call.1']
    #allocation5 [shape = 'u8[8192]{0}', space=vmem, size = 0x2000, scoped, tag = 'output window, operand 0']
    %9 = vsyncpa [#allocation4], 0
    %10 = vsyncpa [#allocation3], 0
    %s11 = scalar_lea.sflag [#allocation3], 1
    %12 = vsyncpa %s11, 0
    loop: start=0, step=1, limit=4
    $region2: #{tpu_custom_call.1} parent=1 // loop_pre_header
      _
    $region3: #{tpu_custom_call.1} parent=1 // loop_header
      %s14 = sphi 0, %s18
      %p15 = scmp.ge.s32.totalorder %s14, 4
      %s21 = sphi 0, %s33
      %s22 = sphi 0, %s29
      %s23 = sphi 0, %s21
      %s24 = sphi 0, %s22
      %s25 = sphi 0, %s23
      %s26 = sphi 0, %s24
      %s34 = sphi 0, %s34
      %s36 = sphi 0, %s34
      %s37 = sphi 0, %s36
      %s51 = sphi 0, %s37
      %s59 = sphi 0, %s61
      %s62 = sphi 0, %s59
      %s63 = sphi 0, %s62
      %s79 = sphi 0, %s63
      %s85 = sphi 0, %s87
      %s88 = sphi 0, %s85
      %s89 = sphi 0, %s88
      %s105 = sphi 0, %s89
      %s113 = sphi 0, %s115
      %s116 = sphi 0, %s113
      %s117 = sphi 0, %s116
      %s133 = sphi 0, %s117
      %s141 = sphi 0, %s143
      %s144 = sphi 0, %s141
      %s145 = sphi 0, %s144
      %s161 = sphi 0, %s145
    $region4: #{tpu_custom_call.1} parent=1 // loop_header_branch
      %17 = sbr.rel (%p15) target = $region8
    $region5: #{tpu_custom_call.1} parent=1 // loop_body
      %s19 = ssub.s32 %s14, 1
      %s20 = ssub.s32 %s14, 2
      %s27 = sadd.s32 1, %s22
      %p28 = scmp.ge.s32.totalorder %s27, 1
      %s29 = scalar_select %p28, 0, %s27
      %s30 = sadd.s32 1, %s21
      %s31 = scalar_select %p28, %s30, %s21
      %p32 = scmp.ge.s32.totalorder %s31, 2
      %s33 = scalar_select %p32, 0, %s31
      %s35 = sadd.s32 %s34, 1
      %p38 = scmp.eq.s32.totalorder %s14, 1
      %p39 = scmp.ne.s32.totalorder %s34, %s36
      %p40 = scmp.eq.s32.totalorder %s14, 0
      %p41 = por %p39, %p40
      %p42 = scmp.ne.s32.totalorder %s34, %s36
      %p43 = scmp.eq.s32.totalorder %s19, 1
      %p44 = por %p42, %p43
      %p45 = scmp.ne.s32.totalorder %s36, %s37
      %p46 = scmp.eq.s32.totalorder %s19, 0
      %p47 = por %p45, %p46
      %p48 = scmp.ne.s32.totalorder %s36, %s37
      %p49 = scmp.eq.s32.totalorder %s20, 1
      %p50 = por %p48, %p49
      %p52 = scmp.ne.s32.totalorder %s37, %s51
      %p53 = scmp.eq.s32.totalorder %s20, 0
      %p54 = por %p52, %p53
      %s55 = ssub.s32 %s21, %s33
      %s56 = ssub.s32 %s22, %s29
      %s57 = sor.u32 %s55, %s56
      %p58 = scmp.eq.s32.totalorder %s57, 0
      %s60 = sadd.s32 %s59, 1
      %s61 = scalar_select %p58, %s59, %s60
      %p64 = pneg %p58
      %p65 = scmp.eq.s32.totalorder %s14, 1
      %p66 = por %p64, %p65
      %p67 = scmp.ne.s32.totalorder %s59, %s62
      %p68 = scmp.eq.s32.totalorder %s14, 0
      %p69 = por %p67, %p68
      %p70 = scmp.ne.s32.totalorder %s59, %s62
      %p71 = scmp.eq.s32.totalorder %s19, 1
      %p72 = por %p70, %p71
      %p73 = scmp.ne.s32.totalorder %s62, %s63
      %p74 = scmp.eq.s32.totalorder %s19, 0
      %p75 = por %p73, %p74
      %p76 = scmp.ne.s32.totalorder %s62, %s63
      %p77 = scmp.eq.s32.totalorder %s20, 1
      %p78 = por %p76, %p77
      %p80 = scmp.ne.s32.totalorder %s63, %s79
      %p81 = scmp.eq.s32.totalorder %s20, 0
      %p82 = por %p80, %p81
      %s83 = ssub.s32 %s22, %s29
      %p84 = scmp.eq.s32.totalorder %s83, 0
      %s86 = sadd.s32 %s85, 1
      %s87 = scalar_select %p84, %s85, %s86
      %p90 = pneg %p84
      %p91 = scmp.eq.s32.totalorder %s14, 1
      %p92 = por %p90, %p91
      %p93 = scmp.ne.s32.totalorder %s85, %s88
      %p94 = scmp.eq.s32.totalorder %s14, 0
      %p95 = por %p93, %p94
      %p96 = scmp.ne.s32.totalorder %s85, %s88
      %p97 = scmp.eq.s32.totalorder %s19, 1
      %p98 = por %p96, %p97
      %p99 = scmp.ne.s32.totalorder %s88, %s89
      %p100 = scmp.eq.s32.totalorder %s19, 0
      %p101 = por %p99, %p100
      %p102 = scmp.ne.s32.totalorder %s88, %s89
      %p103 = scmp.eq.s32.totalorder %s20, 1
      %p104 = por %p102, %p103
      %p106 = scmp.ne.s32.totalorder %s89, %s105
      %p107 = scmp.eq.s32.totalorder %s20, 0
      %p108 = por %p106, %p107
      %s109 = ssub.s32 %s21, %s33
      %s110 = ssub.s32 %s22, %s29
      %s111 = sor.u32 %s109, %s110
      %p112 = scmp.eq.s32.totalorder %s111, 0
      %s114 = sadd.s32 %s113, 1
      %s115 = scalar_select %p112, %s113, %s114
      %p118 = pneg %p112
      %p119 = scmp.eq.s32.totalorder %s14, 1
      %p120 = por %p118, %p119
      %p121 = scmp.ne.s32.totalorder %s113, %s116
      %p122 = scmp.eq.s32.totalorder %s14, 0
      %p123 = por %p121, %p122
      %p124 = scmp.ne.s32.totalorder %s113, %s116
      %p125 = scmp.eq.s32.totalorder %s19, 1
      %p126 = por %p124, %p125
      %p127 = scmp.ne.s32.totalorder %s116, %s117
      %p128 = scmp.eq.s32.totalorder %s19, 0
      %p129 = por %p127, %p128
      %p130 = scmp.ne.s32.totalorder %s116, %s117
      %p131 = scmp.eq.s32.totalorder %s20, 1
      %p132 = por %p130, %p131
      %p134 = scmp.ne.s32.totalorder %s117, %s133
      %p135 = scmp.eq.s32.totalorder %s20, 0
      %p136 = por %p134, %p135
      %s137 = ssub.s32 %s21, %s33
      %s138 = ssub.s32 %s22, %s29
      %s139 = sor.u32 %s137, %s138
      %p140 = scmp.eq.s32.totalorder %s139, 0
      %s142 = sadd.s32 %s141, 1
      %s143 = scalar_select %p140, %s141, %s142
      %p146 = pneg %p140
      %p147 = scmp.eq.s32.totalorder %s14, 1
      %p148 = por %p146, %p147
      %p149 = scmp.ne.s32.totalorder %s141, %s144
      %p150 = scmp.eq.s32.totalorder %s14, 0
      %p151 = por %p149, %p150
      %p152 = scmp.ne.s32.totalorder %s141, %s144
      %p153 = scmp.eq.s32.totalorder %s19, 1
      %p154 = por %p152, %p153
      %p155 = scmp.ne.s32.totalorder %s144, %s145
      %p156 = scmp.eq.s32.totalorder %s19, 0
      %p157 = por %p155, %p156
      %p158 = scmp.ne.s32.totalorder %s144, %s145
      %p159 = scmp.eq.s32.totalorder %s20, 1
      %p160 = por %p158, %p159
      %p162 = scmp.ne.s32.totalorder %s145, %s161
      %p163 = scmp.eq.s32.totalorder %s20, 0
      %p164 = por %p162, %p163
      %p165 = scmp.le.s32.totalorder 1, %s14
      %p166 = scmp.lt.s32.totalorder %s14, 3
      %p167 = pnand %p165, %p166
      %p168 = pneg %p167
      // Predicated region
      $region9: #{tpu_custom_call.1} parent=5 // pred_check
        _
      $region10: #{tpu_custom_call.1} parent=5 // pred_check_branch
        %170 = sbr.rel (%p167) target = $region12
      $region11: #{tpu_custom_call.1} parent=5 // pred_region
        %s171 = ssub.s32 %s14, 1
        // Predicated region
        $region13: #{tpu_custom_call.1} parent=11 // pred_check
          %p172 = pneg %p47
        $region14: #{tpu_custom_call.1} parent=11 // pred_check_branch
          %174 = sbr.rel (%p172) target = $region16
        $region15: #{tpu_custom_call.1} parent=11 // pred_region
          %s176 = ssub.s32 16, 16
          %177 = vsyncadd [#allocation4], %s176
          %s179 = sshll.u32 %s0, 4
          %s180 = int_to_ptr.vmem [resolvable:$true] %s179
          %182 = dma.vmem_to_smem %s180, 16, [#allocation2], [#allocation4]
        $region16: #{tpu_custom_call.1} parent=11 // pred_fallthru
          _
        // Predicated region
        $region17: #{tpu_custom_call.1} parent=11 // pred_check
          %p183 = pneg %p101
        $region18: #{tpu_custom_call.1} parent=11 // pred_check_branch
          %185 = sbr.rel (%p183) target = $region20
        $region19: #{tpu_custom_call.1} parent=11 // pred_region
          %p186 = scmp.lt.s32.totalorder %s24, 7
          %s187 = scalar_select %p186, %s24, 7
          %s188 = smul.addr %s187, 8
          %s189 = scalar_lea.vmem %s2, %s188
        $region20: #{tpu_custom_call.1} parent=11 // pred_fallthru
          _
      $region12: #{tpu_custom_call.1} parent=5 // pred_fallthru
        _
      %p190 = scmp.lt.s32.totalorder %s14, 2
      // Predicated region
      $region21: #{tpu_custom_call.1} parent=5 // pred_check
        %p191 = pneg %p190
      $region22: #{tpu_custom_call.1} parent=5 // pred_check_branch
        %193 = sbr.rel (%p191) target = $region24
      $region23: #{tpu_custom_call.1} parent=5 // pred_region
        // Predicated region
        $region25: #{tpu_custom_call.1} parent=23 // pred_check
          %p194 = pneg %p69
        $region26: #{tpu_custom_call.1} parent=23 // pred_check_branch
          %196 = sbr.rel (%p194) target = $region28
        $region27: #{tpu_custom_call.1} parent=23 // pred_region
          %p197 = scmp.lt.s32.totalorder %s21, 1
          %s198 = scalar_select %p197, %s21, 1
          %p199 = scmp.lt.s32.totalorder %s22, 0
          %s200 = scalar_select %p199, %s22, 0
          %s201 = sadd.s32 %s200, %s198
          %s202 = smul.addr %s201, 8
          %s203 = scalar_lea.vmem %s1, %s202
        $region28: #{tpu_custom_call.1} parent=23 // pred_fallthru
          _
        // Predicated region
        $region29: #{tpu_custom_call.1} parent=23 // pred_check
          %p204 = pneg %p123
        $region30: #{tpu_custom_call.1} parent=23 // pred_check_branch
          %206 = sbr.rel (%p204) target = $region32
        $region31: #{tpu_custom_call.1} parent=23 // pred_region
          %p207 = scmp.lt.s32.totalorder %s21, 1
          %s208 = scalar_select %p207, %s21, 1
          %p209 = scmp.lt.s32.totalorder %s22, 0
          %s210 = scalar_select %p209, %s22, 0
          %s211 = sadd.s32 %s210, %s208
          %s212 = smul.addr %s211, 8
          %s213 = scalar_lea.vmem %s3, %s212
        $region32: #{tpu_custom_call.1} parent=23 // pred_fallthru
          _
      $region24: #{tpu_custom_call.1} parent=5 // pred_fallthru
        _
      %p214 = scmp.le.s32.totalorder 1, %s14
      %p215 = scmp.lt.s32.totalorder %s14, 3
      %p216 = pnand %p214, %p215
      %p217 = pneg %p216
      // Predicated region
      $region33: #{tpu_custom_call.1} parent=5 // pred_check
        _
      $region34: #{tpu_custom_call.1} parent=5 // pred_check_branch
        %219 = sbr.rel (%p216) target = $region36
      $region35: #{tpu_custom_call.1} parent=5 // pred_region
        %s220 = ssub.s32 %s14, 1
        // Predicated region
        $region37: #{tpu_custom_call.1} parent=35 // pred_check
          %p221 = pneg %p47
        $region38: #{tpu_custom_call.1} parent=35 // pred_check_branch
          %223 = sbr.rel (%p221) target = $region40
        $region39: #{tpu_custom_call.1} parent=35 // pred_region
          %224 = dma.done [#allocation4], 16
        $region40: #{tpu_custom_call.1} parent=35 // pred_fallthru
          _
        %225 = sfence
        %p226 = pneg %p47
        %p227 = pneg %p44
        %p228 = scmp.lt.s32.totalorder %s23, 1
        %s229 = scalar_select %p228, %s23, 1
        %p230 = scmp.lt.s32.totalorder %s24, 0
        %s231 = scalar_select %p230, %s24, 0
        %s232 = sadd.s32 %s231, %s229
        %s233 = smul.addr %s232, 8
        %s234 = scalar_lea.vmem %s1, %s233
        %p235 = pneg %p75
        %p236 = pneg %p72
        %p237 = scmp.lt.s32.totalorder %s24, 7
        %s238 = scalar_select %p237, %s24, 7
        %s239 = smul.addr %s238, 8
        %s240 = scalar_lea.vmem %s2, %s239
        %p241 = pneg %p101
        %p242 = pneg %p98
        %p243 = scmp.lt.s32.totalorder %s23, 1
        %s244 = scalar_select %p243, %s23, 1
        %p245 = scmp.lt.s32.totalorder %s24, 0
        %s246 = scalar_select %p245, %s24, 0
        %s247 = sadd.s32 %s246, %s244
        %s248 = smul.addr %s247, 8
        %s249 = scalar_lea.vmem %s3, %s248
        %p250 = pneg %p129
        %p251 = pneg %p126
        %p252 = pneg %p157
        %p253 = pneg %p154
        %s254 = sand.u32 %s144, 1
        %s255 = scalar_lea.sflag [#allocation3], %s254
        %s256 = sand.u32 %s144, 1
        %s257 = smul.addr %s256, 8
        %s258 = scalar_lea.vmem [#allocation5], %s257
        %p259 = scmp.lt.s32.totalorder %s23, 1
        %s260 = scalar_select %p259, %s23, 1
        %p261 = scmp.lt.s32.totalorder %s24, 0
        %s262 = scalar_select %p261, %s24, 0
        %s263 = sadd.s32 %s262, %s260
        %s264 = smul.addr %s263, 8
        %s265 = scalar_lea.vmem %s1, %s264
        %p266 = scmp.lt.s32.totalorder %s24, 7
        %s267 = scalar_select %p266, %s24, 7
        %s268 = smul.addr %s267, 8
        %s269 = scalar_lea.vmem %s2, %s268
        %p270 = scmp.lt.s32.totalorder %s23, 1
        %s271 = scalar_select %p270, %s23, 1
        %p272 = scmp.lt.s32.totalorder %s24, 0
        %s273 = scalar_select %p272, %s24, 0
        %s274 = sadd.s32 %s273, %s271
        %s275 = smul.addr %s274, 8
        %s276 = scalar_lea.vmem %s3, %s275
        %v277 = vld [vmem:[%s276] sm:$0xff]
        %s278 = sld [smem:[#allocation2]]
        %v279 = vstv %s278
        %v280 = vmul.f32 %v277, %v279
        %s281 = sld [smem:[#allocation2 + $0x1]]
        %v282 = vstv %s281
        %v283 = vmul.f32 %v280, %v282
        %v284 = vadd.f32 %v283, 1.0
        %v285 = vld [vmem:[%s265] sm:$0xff]
        %v286 = vld [vmem:[%s269] sm:$0xff]
        %288 = vset.pattern.permute.xlu0 0
        %289 = vperm.xlu0 %288, %v284
        %v290 = vpop.permute.xlu0 %289
        %v292 = vmul.f32 %v286, %v290
        %v293 = vadd.f32 %v285, %v292
        %vm294 = vcmask 261120
        %295 = vst.msk [vmem:[%s258] sm:$0xff] %vm294, %v293
        %s296 = sand.u32 %s144, 1
        %s297 = scalar_lea.sflag [#allocation3], %s296
        %s298 = sand.u32 %s144, 1
        %s299 = smul.addr %s298, 8
        %s300 = scalar_lea.vmem [#allocation5], %s299
        // Predicated region
        $region41: #{tpu_custom_call.1} parent=35 // pred_check
          %p301 = pneg %p154
        $region42: #{tpu_custom_call.1} parent=35 // pred_check_branch
          %303 = sbr.rel (%p301) target = $region44
        $region43: #{tpu_custom_call.1} parent=35 // pred_region
          %s305 = ssub.s32 128, 128
          %306 = vsyncadd %s297, %s305
          %s307 = sadd.s32 %s24, %s23
          %s308 = smul.addr %s307, 128
          %s309 = scalar_lea.hbm %s4, %s308
          %s311 = sshll.u32 %s300, 4
          %s312 = int_to_ptr.vmem [resolvable:$true] %s311
          %314 = dma.vmem_to_hbm [thread:$0]  %s312, 128, %s309, %s297
        $region44: #{tpu_custom_call.1} parent=35 // pred_fallthru
          _
      $region36: #{tpu_custom_call.1} parent=5 // pred_fallthru
        _
      %p315 = scmp.le.s32.totalorder 2, %s14
      // Predicated region
      $region45: #{tpu_custom_call.1} parent=5 // pred_check
        %p316 = pneg %p315
      $region46: #{tpu_custom_call.1} parent=5 // pred_check_branch
        %318 = sbr.rel (%p316) target = $region48
      $region47: #{tpu_custom_call.1} parent=5 // pred_region
        %s319 = ssub.s32 %s14, 2
        // Predicated region
        $region49: #{tpu_custom_call.1} parent=47 // pred_check
          %p320 = pneg %p160
        $region50: #{tpu_custom_call.1} parent=47 // pred_check_branch
          %322 = sbr.rel (%p320) target = $region52
        $region51: #{tpu_custom_call.1} parent=47 // pred_region
          %s323 = sand.u32 %s145, 1
          %s324 = scalar_lea.sflag [#allocation3], %s323
          %s325 = sand.u32 %s145, 1
          %s326 = smul.addr %s325, 8
          %s327 = scalar_lea.vmem [#allocation5], %s326
          %328 = dma.done %s324, 128
        $region52: #{tpu_custom_call.1} parent=47 // pred_fallthru
          _
      $region48: #{tpu_custom_call.1} parent=5 // pred_fallthru
        _
    $region6: #{tpu_custom_call.1} parent=1 // loop_footer
      %s18 = sadd.s32 1, %s14
    $region7: #{tpu_custom_call.1} parent=1 // loop_footer_branch
      %13 = sbr.rel target = $region3
    $region8: #{tpu_custom_call.1} parent=1 // loop_exit
      _
    %329 = vsyncpa [#allocation3], 1
    %s330 = scalar_lea.sflag [#allocation3], 1
    %331 = vsyncpa %s330, 1
    %332 = vsyncpa [#allocation4], 1
    %s333 = scalar_lea.sflag [#allocation4], 1
    %334 = vsyncpa %s333, 1

</llo_original>
